<compile_context>
chip_gen: v7x
topology: tpu7x:2x2x1
jax: 0.10.0
libtpu: 0.0.40
codegen_flags: <defaults>
</compile_context>

<pallas_src>
import numpy as np
import jax
import jax.numpy as jnp
from jax.experimental import pallas as pl
from jax.experimental.pallas import tpu as pltpu

_BN_EPS = 1e-5


# ----------------------------------------------------------------------------
# Kernel 1: 1x1 conv (bias=False) + folded BatchNorm + ReLU
# ----------------------------------------------------------------------------
def _conv1x1_bn_relu_kernel(x_ref, w_ref, b_ref, z_ref):
    # x_ref: (1, tp, C)   token tile of one batch element (native dtype)
    # w_ref: (C, K)       conv weight with BN scale folded in (f32)
    # b_ref: (1, K)       folded BN bias (f32)
    # z_ref: (1, tp, K)   f32 output tile
    z = jnp.dot(x_ref[0], w_ref[...], preferred_element_type=jnp.float32)
    z = jnp.maximum(z + b_ref[...], 0.0)
    z_ref[0] = z.astype(z_ref.dtype)


def _choose_tp(P):
    """Pick a P-tile: whole axis when small, else a divisor that is a multiple of 8."""
    if P <= 256:
        return P
    for t in (256, 128, 64, 32, 16, 8):
        if P % t == 0:
            return t
    return P  # fallback: single tile covering the whole axis


def conv1x1_bn_relu(hidden_bpc, w_folded, bias_folded):
    B, P, C = hidden_bpc.shape
    K = w_folded.shape[-1]
    tp = _choose_tp(P)
    bias2d = bias_folded.reshape(1, K).astype(jnp.float32)
    return pl.pallas_call(
        _conv1x1_bn_relu_kernel,
        out_shape=jax.ShapeDtypeStruct((B, P, K), jnp.float32),
        grid_spec=pltpu.PrefetchScalarGridSpec(
            num_scalar_prefetch=0,
            grid=(B, P // tp),
            in_specs=[
                pl.BlockSpec((1, tp, C), lambda b, p: (b, p, 0)),
                pl.BlockSpec((C, K), lambda b, p: (0, 0)),
                pl.BlockSpec((1, K), lambda b, p: (0, 0)),
            ],
            out_specs=pl.BlockSpec((1, tp, K), lambda b, p: (b, p, 0)),
        ),
        compiler_params=pltpu.CompilerParams(
            dimension_semantics=("parallel", "parallel")),
        # Activations stay in their native dtype (no host upcast); only the
        # folded weight/bias are f32.  Accumulation is f32 via the dot above.
    )(hidden_bpc, w_folded.astype(jnp.float32), bias2d)


# ----------------------------------------------------------------------------
# Kernel 2: bilinear upsample (align_corners=True) via two interpolation matmuls
# ----------------------------------------------------------------------------
def _bilinear_upsample_kernel(z_ref, mh_ref, mwT_ref, o_ref):
    # z_ref:  (1, Kt, h, w)     activation maps for Kt classes of one batch elem
    # mh_ref: (OH, h)           row-interpolation matrix
    # mwT_ref:(w, OW)           column-interpolation matrix (transposed)
    # o_ref:  (1, Kt, OH, OW)   lane-dense output tile (OW in lanes)
    mh = mh_ref[...]
    mwT = mwT_ref[...]
    kt = z_ref.shape[1]
    # Static unrolled per-class loop: two small matmuls per class (contraction
    # dim is only h/w, so no benefit in building a bigger LHS via reshape).
    for c in range(kt):
        u = jnp.dot(z_ref[0, c], mwT, preferred_element_type=jnp.float32)   # (h, OW)
        out = jnp.dot(mh, u, preferred_element_type=jnp.float32)            # (OH, OW)
        o_ref[0, c] = out.astype(o_ref.dtype)


def _bilinear_matrix(n_in, n_out):
    """Dense (n_out, n_in) align_corners=True bilinear interpolation matrix."""
    m = np.zeros((n_out, n_in), dtype=np.float32)
    if n_in == 1:
        m[:, 0] = 1.0
        return jnp.asarray(m)
    src = np.arange(n_out, dtype=np.float64) * (n_in - 1) / (n_out - 1)
    lo = np.clip(np.floor(src).astype(np.int64), 0, n_in - 2)
    frac = (src - lo).astype(np.float32)
    m[np.arange(n_out), lo] = 1.0 - frac
    m[np.arange(n_out), lo + 1] = frac
    return jnp.asarray(m)


def _choose_kt(B, K):
    """Largest divisor Kt of K that still leaves >= 2 grid steps (for pipelining
    / v7x megacore); falls back to whole-K blocking if that is impossible."""
    for kt in sorted({d for d in range(1, K + 1) if K % d == 0}, reverse=True):
        if B * (K // kt) >= 2:
            return kt
    return K


def bilinear_upsample_align_corners(z_bkhw, out_size, out_dtype):
    B, K, h, w = z_bkhw.shape
    OH, OW = out_size
    kt = _choose_kt(B, K)
    mh = _bilinear_matrix(h, OH)                  # (OH, h)
    mwT = jnp.transpose(_bilinear_matrix(w, OW))  # (w, OW)
    return pl.pallas_call(
        _bilinear_upsample_kernel,
        out_shape=jax.ShapeDtypeStruct((B, K, OH, OW), out_dtype),
        grid_spec=pltpu.PrefetchScalarGridSpec(
            num_scalar_prefetch=0,
            grid=(B, K // kt),
            in_specs=[
                pl.BlockSpec((1, kt, h, w), lambda b, g: (b, g, 0, 0)),
                pl.BlockSpec((OH, h), lambda b, g: (0, 0)),
                pl.BlockSpec((w, OW), lambda b, g: (0, 0)),
            ],
            out_specs=pl.BlockSpec((1, kt, OH, OW), lambda b, g: (b, g, 0, 0)),
        ),
        compiler_params=pltpu.CompilerParams(
            dimension_semantics=("parallel", "parallel")),
    )(z_bkhw, mh, mwT)


# ----------------------------------------------------------------------------
# Parameter init (deterministic, synthetic) + BN folding
# ----------------------------------------------------------------------------
def init_decoder_none_params(key, hidden_size, n_classes):
    kw, kg, kb = jax.random.split(key, 3)
    # PyTorch conv weight is (K, C, 1, 1); stored here as (K, C).
    w = jax.random.normal(kw, (n_classes, hidden_size), jnp.float32) / np.sqrt(hidden_size)
    gamma = 1.0 + 0.1 * jax.random.normal(kg, (n_classes,), jnp.float32)
    beta = 0.1 * jax.random.normal(kb, (n_classes,), jnp.float32)
    mean = 0.05 * jnp.arange(n_classes, dtype=jnp.float32)        # running_mean
    var = 1.0 + 0.02 * jnp.arange(n_classes, dtype=jnp.float32)   # running_var
    return {'w': w, 'gamma': gamma, 'beta': beta, 'mean': mean, 'var': var}


def _fold_bn(w_kc, gamma, beta, mean, var):
    scale = gamma / jnp.sqrt(var + _BN_EPS)          # (K,)
    w_folded = jnp.transpose(w_kc * scale[:, None])  # (C, K), BN scale folded in
    bias_folded = beta - mean * scale                # (K,)
    return w_folded, bias_folded


# ----------------------------------------------------------------------------
# Decoder_None forward (accepts (B, n_patch, hidden) like the PyTorch module)
# ----------------------------------------------------------------------------
def decoder_none_forward(params, hidden_states, out_size=(224, 224)):
    B, P, C = hidden_states.shape
    h = int(round(np.sqrt(P)))
    assert h * h == P, "n_patch must be a perfect square"
    K = params['w'].shape[0]

    w_folded, bias_folded = _fold_bn(params['w'], params['gamma'],
                                     params['beta'], params['mean'], params['var'])

    # 1x1 conv + BN + ReLU on the native (B, P, C) token layout;
    # ReShape's permute is absorbed into the matmul (no big HBM transpose).
    z = conv1x1_bn_relu(hidden_states, w_folded, bias_folded)       # (B, P, K) f32

    # Tiny intermediate (B*P*K elems): relayout to (B, K, h, w) in plain XLA
    # (fuses; avoids an in-kernel reshape with h=14 not a multiple of 8).
    z4 = jnp.transpose(z, (0, 2, 1)).reshape(B, K, h, h)

    return bilinear_upsample_align_corners(z4, out_size, hidden_states.dtype)


# ----------------------------------------------------------------------------
# Pure-JAX reference (for correctness check)
# ----------------------------------------------------------------------------
def decoder_none_reference(params, hidden_states, out_size=(224, 224)):
    B, P, C = hidden_states.shape
    h = int(round(np.sqrt(P)))
    x = jnp.transpose(hidden_states, (0, 2, 1)).reshape(B, C, h, h)   # ReShape
    x = x.astype(jnp.float32)
    y = jnp.einsum('kc,bchw->bkhw', params['w'], x)                   # conv1x1, bias=False
    scale = params['gamma'] / jnp.sqrt(params['var'] + _BN_EPS)
    shift = params['beta'] - params['mean'] * scale
    y = y * scale[None, :, None, None] + shift[None, :, None, None]   # BN (eval)
    y = jnp.maximum(y, 0.0)                                           # ReLU
    mh = _bilinear_matrix(h, out_size[0])
    mw = _bilinear_matrix(h, out_size[1])
    out = jnp.einsum('oh,bkhw,pw->bkop', mh, y, mw)                   # bilinear, align_corners
    return out.astype(hidden_states.dtype)


if __name__ == "__main__":
    key = jax.random.PRNGKey(0)
    kx, kp = jax.random.split(key)

    # Small shapes consistent with the module: (B, n_patch, hidden), square n_patch.
    B, n_patch, hidden_size, n_classes = 2, 16, 32, 4   # h = w = 4
    hidden_states = jax.random.normal(kx, (B, n_patch, hidden_size), jnp.float32)
    params = init_decoder_none_params(kp, hidden_size, n_classes)

    out = decoder_none_forward(params, hidden_states)   # module upsamples to 224x224
    out = jax.block_until_ready(out)
    assert out.shape == (B, n_classes, 224, 224), out.shape

    ref = decoder_none_reference(params, hidden_states)
    np.testing.assert_allclose(np.asarray(out), np.asarray(ref), rtol=1e-4, atol=1e-4)
    print("KERNEL_OK")
</pallas_src>

<mosaic_0001>
module attributes {stable_mosaic.version = 11 : i64} {
  func.func @_conv1x1_bn_relu_kernel(%arg0: i32, %arg1: i32, %arg2: memref<1x16x32xf32, #tpu.memory_space<vmem>>, %arg3: memref<32x4xf32, #tpu.memory_space<vmem>>, %arg4: memref<1x4xf32, #tpu.memory_space<vmem>>, %arg5: memref<1x16x4xf32, #tpu.memory_space<vmem>>) attributes {dimension_semantics = [#tpu.dimension_semantics<parallel>, #tpu.dimension_semantics<parallel>], iteration_bounds = array<i64: 2, 1>, scalar_prefetch = 0 : i64, scratch_operands = 0 : i64, tpu.core_type = #tpu.core_type<tc>, window_params = [{transform_indices = @transform_0, window_bounds = array<i64: 1, 16, 32>}, {pipeline_mode = #tpu.pipeline_mode<synchronous>, transform_indices = @transform_1, window_bounds = array<i64: 32, 4>}, {pipeline_mode = #tpu.pipeline_mode<synchronous>, transform_indices = @transform_2, window_bounds = array<i64: 1, 4>}, {transform_indices = @transform_3, window_bounds = array<i64: 1, 16, 4>}]} {
    %c0 = arith.constant 0 : index
    %c0_0 = arith.constant 0 : index
    %c0_1 = arith.constant 0 : index
    %0 = vector.load %arg2[%c0, %c0_0, %c0_1] : memref<1x16x32xf32, #tpu.memory_space<vmem>>, vector<1x16x32xf32>
    %1 = vector.shape_cast %0 : vector<1x16x32xf32> to vector<16x32xf32>
    %c0_2 = arith.constant 0 : index
    %c0_3 = arith.constant 0 : index
    %2 = vector.load %arg3[%c0_2, %c0_3] : memref<32x4xf32, #tpu.memory_space<vmem>>, vector<32x4xf32>
    %cst = arith.constant dense<0.000000e+00> : vector<16x4xf32>
    %3 = tpu.matmul %1, %2, %cst {dimension_numbers = #tpu.dot_dimension_numbers<[1], [0], [0], [1], [0, 0, 1, 1], [], []>} : vector<16x32xf32>, vector<32x4xf32>, vector<16x4xf32> -> vector<16x4xf32>
    %c0_4 = arith.constant 0 : index
    %c0_5 = arith.constant 0 : index
    %4 = vector.load %arg4[%c0_4, %c0_5] : memref<1x4xf32, #tpu.memory_space<vmem>>, vector<1x4xf32>
    %5 = vector.broadcast %4 : vector<1x4xf32> to vector<16x4xf32>
    %6 = arith.addf %3, %5 : vector<16x4xf32>
    %cst_6 = arith.constant 0.000000e+00 : f32
    %7 = vector.broadcast %cst_6 : f32 to vector<16x4xf32>
    %8 = arith.maximumf %6, %7 : vector<16x4xf32>
    %c0_7 = arith.constant 0 : index
    %c0_8 = arith.constant 0 : index
    %c0_9 = arith.constant 0 : index
    %9 = vector.load %arg5[%c0_7, %c0_8, %c0_9] : memref<1x16x4xf32, #tpu.memory_space<vmem>>, vector<1x16x4xf32>
    %10 = vector.shape_cast %9 : vector<1x16x4xf32> to vector<16x4xf32>
    %11 = vector.shape_cast %8 : vector<16x4xf32> to vector<1x16x4xf32>
    tpu.vector_store %arg5[%c0_7, %c0_8, %c0_9], %11 {strides = array<i32>} : memref<1x16x4xf32, #tpu.memory_space<vmem>>, vector<1x16x4xf32>,
    return
  }
  func.func @transform_0(%arg0: i32, %arg1: i32) -> (i32, i32, i32) {
    %c0_i32 = arith.constant 0 : i32
    %c0_i32_0 = arith.constant 0 : i32
    return %arg0, %arg1, %c0_i32 : i32, i32, i32
  }
  func.func @transform_1(%arg0: i32, %arg1: i32) -> (i32, i32) {
    %c0_i32 = arith.constant 0 : i32
    %c0_i32_0 = arith.constant 0 : i32
    %c0_i32_1 = arith.constant 0 : i32
    return %c0_i32, %c0_i32_0 : i32, i32
  }
  func.func @transform_2(%arg0: i32, %arg1: i32) -> (i32, i32) {
    %c0_i32 = arith.constant 0 : i32
    %c0_i32_0 = arith.constant 0 : i32
    %c0_i32_1 = arith.constant 0 : i32
    return %c0_i32, %c0_i32_0 : i32, i32
  }
  func.func @transform_3(%arg0: i32, %arg1: i32) -> (i32, i32, i32) {
    %c0_i32 = arith.constant 0 : i32
    %c0_i32_0 = arith.constant 0 : i32
    return %arg0, %arg1, %c0_i32 : i32, i32, i32
  }
}

</mosaic_0001>

<llo_original>
// kernel: tpu_custom_call.1
$region0: #{tpu_custom_call.1}
  #allocation0 [shape = 'u32[]', space=smem, size = 0x4, offset = 0x4, fixed_abs, tag = 'smem constant byte address 0x4 - core index']
  #allocation1 [shape = 'u32[144,128]{1,0:T(1,128)}', space=vmem, size = 0x12000, scoped, tag = 'internal scratch']
  %s0 = inlined_call_operand.vmem [shape: f32[2,16,32], index: 0, kind: input, shape index: {}]
  %s1 = inlined_call_operand.vmem [shape: f32[32,4], index: 1, kind: input, shape index: {}]
  %s2 = inlined_call_operand.vmem [shape: f32[1,4], index: 2, kind: input, shape index: {}]
  %s3 = inlined_call_operand.vmem [shape: f32[2,16,4], index: 3, kind: output, shape index: {}]
  %s4 = sld [smem:[#allocation0]]
  $region45: #{tpu_custom_call.1} parent=0
    _
  %s6 = ssub.s32 1, %s4
  %s7 = scalar_select 0, %s6, %s4
  loop: start=0, step=1, limit=4
  $region2: #{tpu_custom_call.1} parent=0 // loop_pre_header
    _
  $region3: #{tpu_custom_call.1} parent=0 // loop_header
    %s9 = sphi 0, %s13
    %p10 = scmp.ge.s32.totalorder %s9, 4
    %s16 = sphi 0, %s28
    %s17 = sphi 0, %s24
    %s18 = sphi 0, %s16
    %s19 = sphi 0, %s17
    %s20 = sphi 0, %s18
    %s21 = sphi 0, %s19
    %s33 = sphi 0, %s35
    %s36 = sphi 0, %s33
    %s37 = sphi 0, %s36
    %s53 = sphi 0, %s37
    %s57 = sphi 0, %s57
    %s59 = sphi 0, %s57
    %s60 = sphi 0, %s59
    %s74 = sphi 0, %s60
    %s78 = sphi 0, %s78
    %s80 = sphi 0, %s78
    %s81 = sphi 0, %s80
    %s95 = sphi 0, %s81
    %s103 = sphi 0, %s105
    %s106 = sphi 0, %s103
    %s107 = sphi 0, %s106
    %s123 = sphi 0, %s107
  $region4: #{tpu_custom_call.1} parent=0 // loop_header_branch
    %12 = sbr.rel (%p10) target = $region8
  $region5: #{tpu_custom_call.1} parent=0 // loop_body
    %s14 = ssub.s32 %s9, 1
    %s15 = ssub.s32 %s9, 2
    %s22 = sadd.s32 1, %s17
    %p23 = scmp.ge.s32.totalorder %s22, 1
    %s24 = scalar_select %p23, 0, %s22
    %s25 = sadd.s32 1, %s16
    %s26 = scalar_select %p23, %s25, %s16
    %p27 = scmp.ge.s32.totalorder %s26, 2
    %s28 = scalar_select %p27, 0, %s26
    %s29 = ssub.s32 %s16, %s28
    %s30 = ssub.s32 %s17, %s24
    %s31 = sor.u32 %s29, %s30
    %p32 = scmp.eq.s32.totalorder %s31, 0
    %s34 = sadd.s32 %s33, 1
    %s35 = scalar_select %p32, %s33, %s34
    %p38 = pneg %p32
    %p39 = scmp.eq.s32.totalorder %s9, 1
    %p40 = por %p38, %p39
    %p41 = scmp.ne.s32.totalorder %s33, %s36
    %p42 = scmp.eq.s32.totalorder %s9, 0
    %p43 = por %p41, %p42
    %p44 = scmp.ne.s32.totalorder %s33, %s36
    %p45 = scmp.eq.s32.totalorder %s14, 1
    %p46 = por %p44, %p45
    %p47 = scmp.ne.s32.totalorder %s36, %s37
    %p48 = scmp.eq.s32.totalorder %s14, 0
    %p49 = por %p47, %p48
    %p50 = scmp.ne.s32.totalorder %s36, %s37
    %p51 = scmp.eq.s32.totalorder %s15, 1
    %p52 = por %p50, %p51
    %p54 = scmp.ne.s32.totalorder %s37, %s53
    %p55 = scmp.eq.s32.totalorder %s15, 0
    %p56 = por %p54, %p55
    %s58 = sadd.s32 %s57, 1
    %p61 = scmp.eq.s32.totalorder %s9, 1
    %p62 = scmp.ne.s32.totalorder %s57, %s59
    %p63 = scmp.eq.s32.totalorder %s9, 0
    %p64 = por %p62, %p63
    %p65 = scmp.ne.s32.totalorder %s57, %s59
    %p66 = scmp.eq.s32.totalorder %s14, 1
    %p67 = por %p65, %p66
    %p68 = scmp.ne.s32.totalorder %s59, %s60
    %p69 = scmp.eq.s32.totalorder %s14, 0
    %p70 = por %p68, %p69
    %p71 = scmp.ne.s32.totalorder %s59, %s60
    %p72 = scmp.eq.s32.totalorder %s15, 1
    %p73 = por %p71, %p72
    %p75 = scmp.ne.s32.totalorder %s60, %s74
    %p76 = scmp.eq.s32.totalorder %s15, 0
    %p77 = por %p75, %p76
    %s79 = sadd.s32 %s78, 1
    %p82 = scmp.eq.s32.totalorder %s9, 1
    %p83 = scmp.ne.s32.totalorder %s78, %s80
    %p84 = scmp.eq.s32.totalorder %s9, 0
    %p85 = por %p83, %p84
    %p86 = scmp.ne.s32.totalorder %s78, %s80
    %p87 = scmp.eq.s32.totalorder %s14, 1
    %p88 = por %p86, %p87
    %p89 = scmp.ne.s32.totalorder %s80, %s81
    %p90 = scmp.eq.s32.totalorder %s14, 0
    %p91 = por %p89, %p90
    %p92 = scmp.ne.s32.totalorder %s80, %s81
    %p93 = scmp.eq.s32.totalorder %s15, 1
    %p94 = por %p92, %p93
    %p96 = scmp.ne.s32.totalorder %s81, %s95
    %p97 = scmp.eq.s32.totalorder %s15, 0
    %p98 = por %p96, %p97
    %s99 = ssub.s32 %s16, %s28
    %s100 = ssub.s32 %s17, %s24
    %s101 = sor.u32 %s99, %s100
    %p102 = scmp.eq.s32.totalorder %s101, 0
    %s104 = sadd.s32 %s103, 1
    %s105 = scalar_select %p102, %s103, %s104
    %p108 = pneg %p102
    %p109 = scmp.eq.s32.totalorder %s9, 1
    %p110 = por %p108, %p109
    %p111 = scmp.ne.s32.totalorder %s103, %s106
    %p112 = scmp.eq.s32.totalorder %s9, 0
    %p113 = por %p111, %p112
    %p114 = scmp.ne.s32.totalorder %s103, %s106
    %p115 = scmp.eq.s32.totalorder %s14, 1
    %p116 = por %p114, %p115
    %p117 = scmp.ne.s32.totalorder %s106, %s107
    %p118 = scmp.eq.s32.totalorder %s14, 0
    %p119 = por %p117, %p118
    %p120 = scmp.ne.s32.totalorder %s106, %s107
    %p121 = scmp.eq.s32.totalorder %s15, 1
    %p122 = por %p120, %p121
    %p124 = scmp.ne.s32.totalorder %s107, %s123
    %p125 = scmp.eq.s32.totalorder %s15, 0
    %p126 = por %p124, %p125
    %p127 = scmp.le.s32.totalorder 1, %s9
    %p128 = scmp.lt.s32.totalorder %s9, 3
    %p129 = pnand %p127, %p128
    %p130 = pneg %p129
    // Predicated region
    $region9: #{tpu_custom_call.1} parent=5 // pred_check
      _
    $region10: #{tpu_custom_call.1} parent=5 // pred_check_branch
      %132 = sbr.rel (%p129) target = $region12
    $region11: #{tpu_custom_call.1} parent=5 // pred_region
      %s133 = ssub.s32 %s9, 1
      // Predicated region
      $region13: #{tpu_custom_call.1} parent=11 // pred_check
        %p134 = pneg %p70
      $region14: #{tpu_custom_call.1} parent=11 // pred_check_branch
        %136 = sbr.rel (%p134) target = $region16
      $region15: #{tpu_custom_call.1} parent=11 // pred_region
        _
      $region16: #{tpu_custom_call.1} parent=11 // pred_fallthru
        _
      // Predicated region
      $region17: #{tpu_custom_call.1} parent=11 // pred_check
        %p137 = pneg %p91
      $region18: #{tpu_custom_call.1} parent=11 // pred_check_branch
        %139 = sbr.rel (%p137) target = $region20
      $region19: #{tpu_custom_call.1} parent=11 // pred_region
        _
      $region20: #{tpu_custom_call.1} parent=11 // pred_fallthru
        _
    $region12: #{tpu_custom_call.1} parent=5 // pred_fallthru
      _
    %p140 = scmp.lt.s32.totalorder %s9, 2
    // Predicated region
    $region21: #{tpu_custom_call.1} parent=5 // pred_check
      %p141 = pneg %p140
    $region22: #{tpu_custom_call.1} parent=5 // pred_check_branch
      %143 = sbr.rel (%p141) target = $region24
    $region23: #{tpu_custom_call.1} parent=5 // pred_region
      // Predicated region
      $region25: #{tpu_custom_call.1} parent=23 // pred_check
        %p144 = pneg %p43
      $region26: #{tpu_custom_call.1} parent=23 // pred_check_branch
        %146 = sbr.rel (%p144) target = $region28
      $region27: #{tpu_custom_call.1} parent=23 // pred_region
        %s147 = smul.u32 2, %s17
        %p148 = scmp.lt.s32.totalorder %s16, 1
        %s149 = scalar_select %p148, %s16, 1
        %p150 = scmp.lt.s32.totalorder %s147, 1
        %s151 = scalar_select %p150, %s147, 1
        %s152 = smul.addr %s149, 2
        %s153 = sadd.s32 %s151, %s152
        %s154 = smul.addr %s153, 8
        %s155 = scalar_lea.vmem %s0, %s154
        %s156 = smul.u32 2, %s17
      $region28: #{tpu_custom_call.1} parent=23 // pred_fallthru
        _
    $region24: #{tpu_custom_call.1} parent=5 // pred_fallthru
      _
    %p157 = scmp.le.s32.totalorder 1, %s9
    %p158 = scmp.lt.s32.totalorder %s9, 3
    %p159 = pnand %p157, %p158
    %p160 = pneg %p159
    // Predicated region
    $region29: #{tpu_custom_call.1} parent=5 // pred_check
      _
    $region30: #{tpu_custom_call.1} parent=5 // pred_check_branch
      %162 = sbr.rel (%p159) target = $region32
    $region31: #{tpu_custom_call.1} parent=5 // pred_region
      %s163 = ssub.s32 %s9, 1
      %s164 = smul.u32 2, %s19
      %p165 = scmp.lt.s32.totalorder %s18, 1
      %s166 = scalar_select %p165, %s18, 1
      %p167 = scmp.lt.s32.totalorder %s164, 1
      %s168 = scalar_select %p167, %s164, 1
      %s169 = smul.addr %s166, 2
      %s170 = sadd.s32 %s168, %s169
      %s171 = smul.addr %s170, 8
      %s172 = scalar_lea.vmem %s0, %s171
      %p173 = pneg %p49
      %p174 = pneg %p46
      %p175 = pneg %p70
      %p176 = pneg %p67
      %p177 = pneg %p91
      %p178 = pneg %p88
      %p179 = pneg %p119
      %p180 = pneg %p116
      %s181 = smul.u32 2, %s19
      %p182 = scmp.lt.s32.totalorder %s18, 1
      %s183 = scalar_select %p182, %s18, 1
      %p184 = scmp.lt.s32.totalorder %s181, 1
      %s185 = scalar_select %p184, %s181, 1
      %s186 = smul.addr %s183, 2
      %s187 = sadd.s32 %s185, %s186
      %s188 = smul.addr %s187, 8
      %s189 = scalar_lea.vmem %s3, %s188
      %s190 = smul.u32 2, %s19
      %p191 = scmp.lt.s32.totalorder %s18, 1
      %s192 = scalar_select %p191, %s18, 1
      %p193 = scmp.lt.s32.totalorder %s190, 1
      %s194 = scalar_select %p193, %s190, 1
      %s195 = smul.addr %s192, 2
      %s196 = sadd.s32 %s194, %s195
      %s197 = smul.addr %s196, 8
      %s198 = scalar_lea.vmem %s0, %s197
      %s199 = smul.u32 2, %s19
      %s200 = smul.u32 2, %s19
      %p201 = scmp.lt.s32.totalorder %s18, 1
      %s202 = scalar_select %p201, %s18, 1
      %p203 = scmp.lt.s32.totalorder %s200, 1
      %s204 = scalar_select %p203, %s200, 1
      %s205 = smul.addr %s202, 2
      %s206 = sadd.s32 %s204, %s205
      %s207 = smul.addr %s206, 8
      %s208 = scalar_lea.vmem %s3, %s207
      %s209 = smul.u32 2, %s19
      %v210 = vld [vmem:[%s198] sm:$0xff]
      %v211 = vld [vmem:[%s198 + $0x8] sm:$0xff]
      %v212 = vld [vmem:[%s1] sm:$0xff]
      %v213 = vld [vmem:[%s1 + $0x8] sm:$0xff]
      %v214 = vld [vmem:[%s1 + $0x10] sm:$0xff]
      %v215 = vld [vmem:[%s1 + $0x18] sm:$0xff]
      %v216 = vld [vmem:[%s2] sm:$0x1]
      %v218 = vlaneseq
      %v219 = vshrl.u32 %v218, 7
      %v220 = vsub.s32 0, %v219
      %v221 = vrot.slane %v216, %v220
      %vm223 = vcmask 261120
      %v225 = vsel %vm223, %v210, 0
      %v228 = vsel %vm223, %v211, 0
      %230 = vmatprep.subr.mxu0 0.0
      %231 = vmatpush1.msra.mxu0 %v212
      %232 = vmatprep.subr.mxu0 0.0
      %233 = vmatpush1.msra.mxu0 %v213
      %234 = vmatprep.subr.mxu0 0.0
      %235 = vmatpush1.msra.mxu0 %v214
      %236 = vmatprep.subr.mxu0 0.0
      %237 = vmatpush1.msra.mxu0 %v215
      %238 = vmatprep.subr.mxu0 0.0
      %239 = vmatpush1.msra.mxu0 0.0
      %240 = vmatprep.subr.mxu0 0.0
      %241 = vmatpush1.msra.mxu0 0.0
      %242 = vmatprep.subr.mxu0 0.0
      %243 = vmatpush1.msra.mxu0 0.0
      %244 = vmatprep.subr.mxu0 0.0
      %245 = vmatpush1.msra.mxu0 0.0
      %246 = vmatprep.subr.mxu0 0.0
      %247 = vmatpush1.msra.mxu0 0.0
      %248 = vmatprep.subr.mxu0 0.0
      %249 = vmatpush1.msra.mxu0 0.0
      %250 = vmatprep.subr.mxu0 0.0
      %251 = vmatpush1.msra.mxu0 0.0
      %252 = vmatprep.subr.mxu0 0.0
      %253 = vmatpush1.msra.mxu0 0.0
      %254 = vmatprep.subr.mxu0 0.0
      %255 = vmatpush1.msra.mxu0 0.0
      %256 = vmatprep.subr.mxu0 0.0
      %257 = vmatpush1.msra.mxu0 0.0
      %258 = vmatprep.subr.mxu0 0.0
      %259 = vmatpush1.msra.mxu0 0.0
      %260 = vmatprep.subr.mxu0 0.0
      %261 = vmatpush1.msra.mxu0 0.0
      %262 = vmatprep.subr.mxu0 0.0
      %263 = vmatpush1.msra.mxu0 0.0
      %264 = vmatprep.subr.mxu0 0.0
      %265 = vmatpush1.msra.mxu0 0.0
      %266 = vmatprep.subr.mxu0 0.0
      %267 = vmatpush1.msra.mxu0 0.0
      %268 = vmatprep.subr.mxu0 0.0
      %269 = vmatpush1.msra.mxu0 0.0
      %270 = vmatprep.subr.mxu0 0.0
      %271 = vmatpush1.msra.mxu0 0.0
      %272 = vmatprep.subr.mxu0 0.0
      %273 = vmatpush1.msra.mxu0 0.0
      %274 = vmatprep.subr.mxu0 0.0
      %275 = vmatpush1.msra.mxu0 0.0
      %276 = vmatprep.subr.mxu0 0.0
      %277 = vmatpush1.msra.mxu0 0.0
      %278 = vmatprep.subr.mxu0 0.0
      %279 = vmatpush1.msra.mxu0 0.0
      %280 = vmatprep.subr.mxu0 0.0
      %281 = vmatpush1.msra.mxu0 0.0
      %282 = vmatprep.subr.mxu0 0.0
      %283 = vmatpush1.msra.mxu0 0.0
      %284 = vmatprep.subr.mxu0 0.0
      %285 = vmatpush1.msra.mxu0 0.0
      %286 = vmatprep.subr.mxu0 0.0
      %287 = vmatpush1.msra.mxu0 0.0
      %288 = vmatprep.subr.mxu0 0.0
      %289 = vmatpush1.msra.mxu0 0.0
      %290 = vmatprep.subr.mxu0 0.0
      %291 = vmatpush1.msra.mxu0 0.0
      %292 = vmatprep.subr.mxu0 0.0
      %293 = vmatpush1.msra.mxu0 0.0
      %294 = vmatprep.mubr.f32.mxu0 0.0
      %295 = vmatmul.mubr.f32.gmra.mrb[0].mxu0 %v225
      %v296 = vpop.f32.mrb[0].mxu0
      %v297 = vadd.f32 %v221, %v296
      %v298 = vpop.f32.mrb[0].mxu0
      %299 = vmatprep.mubr.f32.mxu0 0.0
      %300 = vmatmul.mubr.f32.gmra.mrb[0].mxu0 %v228
      %v301 = vpop.f32.mrb[0].mxu0
      %v302 = vadd.f32 %v221, %v301
      %v303 = vpop.f32.mrb[0].mxu0
      %304 = vdwg.mxu0
      %v305 = vmax.f32 %v297, 0.0
      %v306 = vmax.f32 %v302, 0.0
      %vm307 = vcmask 31744
      %308 = vst.msk [vmem:[%s208] sm:$0xff] %vm307, %v305
      %309 = vst.msk [vmem:[%s208 + $0x8] sm:$0xff] %vm307, %v306
      %s310 = smul.u32 2, %s19
      %p311 = scmp.lt.s32.totalorder %s18, 1
      %s312 = scalar_select %p311, %s18, 1
      %p313 = scmp.lt.s32.totalorder %s310, 1
      %s314 = scalar_select %p313, %s310, 1
      %s315 = smul.addr %s312, 2
      %s316 = sadd.s32 %s314, %s315
      %s317 = smul.addr %s316, 8
      %s318 = scalar_lea.vmem %s3, %s317
      // Predicated region
      $region33: #{tpu_custom_call.1} parent=31 // pred_check
        %p319 = pneg %p116
      $region34: #{tpu_custom_call.1} parent=31 // pred_check_branch
        %321 = sbr.rel (%p319) target = $region36
      $region35: #{tpu_custom_call.1} parent=31 // pred_region
        %s322 = smul.u32 2, %s19
      $region36: #{tpu_custom_call.1} parent=31 // pred_fallthru
        _
    $region32: #{tpu_custom_call.1} parent=5 // pred_fallthru
      _
    %p323 = scmp.le.s32.totalorder 2, %s9
    // Predicated region
    $region37: #{tpu_custom_call.1} parent=5 // pred_check
      %p324 = pneg %p323
    $region38: #{tpu_custom_call.1} parent=5 // pred_check_branch
      %326 = sbr.rel (%p324) target = $region40
    $region39: #{tpu_custom_call.1} parent=5 // pred_region
      %s327 = ssub.s32 %s9, 2
      // Predicated region
      $region41: #{tpu_custom_call.1} parent=39 // pred_check
        %p328 = pneg %p122
      $region42: #{tpu_custom_call.1} parent=39 // pred_check_branch
        %330 = sbr.rel (%p328) target = $region44
      $region43: #{tpu_custom_call.1} parent=39 // pred_region
        %s331 = smul.u32 2, %s21
        %p332 = scmp.lt.s32.totalorder %s20, 1
        %s333 = scalar_select %p332, %s20, 1
        %p334 = scmp.lt.s32.totalorder %s331, 1
        %s335 = scalar_select %p334, %s331, 1
        %s336 = smul.addr %s333, 2
        %s337 = sadd.s32 %s335, %s336
        %s338 = smul.addr %s337, 8
        %s339 = scalar_lea.vmem %s3, %s338
      $region44: #{tpu_custom_call.1} parent=39 // pred_fallthru
        _
    $region40: #{tpu_custom_call.1} parent=5 // pred_fallthru
      _
  $region6: #{tpu_custom_call.1} parent=0 // loop_footer
    %s13 = sadd.s32 1, %s9
  $region7: #{tpu_custom_call.1} parent=0 // loop_footer_branch
    %8 = sbr.rel target = $region3
  $region8: #{tpu_custom_call.1} parent=0 // loop_exit
    _

</llo_original>
